<compile_context>
chip_gen: v7x
topology: tpu7x:2x2x1
jax: 0.10.0
libtpu: 0.0.40
codegen_flags: <defaults>
</compile_context>

<pallas_src>
import functools

import jax
import jax.numpy as jnp
from jax.experimental import pallas as pl
from jax.experimental.pallas import tpu as pltpu


# --------------------------------------------------------------------------
# Kernel
# --------------------------------------------------------------------------
def _cbam_kernel(x_ref, w1t_ref, b1_ref, w2t_ref, b2_ref, msa_ref, bsa_ref,
                 o_ref):
    # x_ref block: (Bt, C, HW) in the I/O dtype; all math in f32.
    x = x_ref[...].astype(jnp.float32)                      # (Bt, C, HW)
    bt = x.shape[0]
    mxu_dt = w1t_ref.dtype                                  # bf16 (default) or f32

    # ---------------- Channel attention ----------------
    # Global average / max pool over the spatial (lane) axis.
    avg = jnp.mean(x, axis=-1)                              # (Bt, C)
    mx = jnp.max(x, axis=-1)                                # (Bt, C)
    # Stack the 2*Bt pooled vectors -> one MXU pass through fc1 / fc2.
    pooled = jnp.concatenate([avg, mx], axis=0).astype(mxu_dt)   # (2*Bt, C)

    h = jnp.dot(pooled, w1t_ref[...],
                preferred_element_type=jnp.float32) + b1_ref[...]     # (2*Bt, Cr)
    h = jnp.maximum(h, 0.0).astype(mxu_dt)
    y = jnp.dot(h, w2t_ref[...],
                preferred_element_type=jnp.float32) + b2_ref[...]     # (2*Bt, C)

    ca = jax.nn.sigmoid(y[:bt] + y[bt:])                    # (Bt, C)
    x_ca = x * ca[:, :, None]                               # (Bt, C, HW)

    # ---------------- Spatial attention ----------------
    # Mean / max over the channel (sublane) axis.
    avg_c = jnp.mean(x_ca, axis=1)                          # (Bt, HW)
    max_c = jnp.max(x_ca, axis=1)                           # (Bt, HW)

    # Single fused MXU matmul: [avg_c | max_c] @ [M_avg ; M_max].
    sp = jnp.concatenate([avg_c, max_c], axis=-1).astype(mxu_dt)     # (Bt, 2*HW)
    logits = jnp.dot(sp, msa_ref[...],
                     preferred_element_type=jnp.float32) + bsa_ref[...]  # (Bt, HW)
    sa = jax.nn.sigmoid(logits)                             # (Bt, HW)

    o_ref[...] = (x_ca * sa[:, None, :]).astype(o_ref.dtype)


# --------------------------------------------------------------------------
# Wrapper helpers
# --------------------------------------------------------------------------
def _pick_block_batch(batch, c, hw, itemsize, target_bytes, min_steps):
    """Largest Bt dividing `batch` with block <= target_bytes and >= min_steps
    grid steps (as long as batch allows it)."""
    per_sample = max(1, c * hw * itemsize)
    bt = max(1, target_bytes // per_sample)
    steps = max(1, min(min_steps, batch))
    bt = min(int(bt), max(1, batch // steps), batch)
    bt = max(1, bt)
    while batch % bt:
        bt -= 1
    return bt


def _conv_toeplitz(w_ch, h, w, ks):
    """Build M (HW, HW) with M[q, p] = w_ch[dy+pad, dx+pad] for valid neighbors,
    so that conv2d(in, w_ch, padding=ks//2)  ==  in_flat @ M  (per sample).
    Matches PyTorch/XLA cross-correlation semantics."""
    pad = ks // 2
    hw = h * w
    p = jnp.arange(hw, dtype=jnp.int32)
    rq, cq = (p // w)[:, None], (p % w)[:, None]     # source pixel q (rows)
    rp, cp = (p // w)[None, :], (p % w)[None, :]     # output pixel p (cols)
    dy, dx = rq - rp, cq - cp
    valid = (jnp.abs(dy) <= pad) & (jnp.abs(dx) <= pad)
    idx = jnp.clip(dy + pad, 0, ks - 1) * ks + jnp.clip(dx + pad, 0, ks - 1)
    return jnp.where(valid, w_ch.reshape(-1)[idx], 0.0).astype(jnp.float32)


# --------------------------------------------------------------------------
# Public entry point
# --------------------------------------------------------------------------
@functools.partial(jax.jit, static_argnames=("mxu_dtype",))
def cbam_forward(x, w1, b1, w2, b2, w_sa, b_sa, *, mxu_dtype=jnp.bfloat16):
    """CBAM forward.

    x:    (B, C, H, W)  (I/O stays in x.dtype; math is f32 inside the kernel)
    w1:   (Cr, C)   fc1 weight (1x1 conv squeezed), b1: (Cr,)
    w2:   (C, Cr)   fc2 weight,                     b2: (C,)
    w_sa: (2, ks, ks) spatial-attention conv weight (out-channel squeezed)
    b_sa: (1,)        spatial-attention conv bias
    mxu_dtype: dtype of the matmul constants / MXU inputs (bf16 default).
    """
    B, C, H, W = x.shape
    HW = H * W
    Cr = w1.shape[0]
    ks = w_sa.shape[-1]
    io_dtype = x.dtype
    itemsize = jnp.dtype(io_dtype).itemsize
    mxu_itemsize = jnp.dtype(mxu_dtype).itemsize

    # Generation-aware sizing (trace-time Python; fall back conservatively).
    try:
        vmem_cap = int(pltpu.get_tpu_info().vmem_capacity_bytes)
    except Exception:  # noqa: BLE001 - any failure -> conservative default
        vmem_cap = 64 << 20
    if vmem_cap <= (96 << 20):           # v7x-like: 64 MiB physical VMEM
        target_bytes, min_steps = 3 << 20, 4   # >= 2 grid steps per TensorCore
    else:                                # v5e / v6e: 128 MiB VMEM
        target_bytes, min_steps = 6 << 20, 2

    bt = _pick_block_batch(B, C, HW, itemsize, target_bytes, min_steps)

    # Constants: MXU operands in mxu_dtype (bf16 default), biases in f32.
    w1_t = w1.T.astype(mxu_dtype)                         # (C, Cr)
    w2_t = w2.T.astype(mxu_dtype)                         # (Cr, C)
    b1r = b1.reshape(1, Cr).astype(jnp.float32)
    b2r = b2.reshape(1, C).astype(jnp.float32)
    m_avg = _conv_toeplitz(w_sa[0], H, W, ks)             # (HW, HW)
    m_max = _conv_toeplitz(w_sa[1], H, W, ks)             # (HW, HW)
    m_sa = jnp.concatenate([m_avg, m_max], axis=0).astype(mxu_dtype)  # (2*HW, HW)
    b_sa2 = b_sa.reshape(1, 1).astype(jnp.float32)

    const_bytes = ((C * Cr + Cr * C + 2 * HW * HW) * mxu_itemsize
                   + (Cr + C + 1) * 4)

    def _vmem_need(bt_):
        blk = bt_ * C * HW * itemsize          # one I/O block
        f32_blk = bt_ * C * HW * 4             # one in-kernel f32 temp slab
        # double-buffered in + out blocks, ~2 f32 temps (x, x_ca),
        # (possibly double-buffered) constants, headroom.
        return 4 * blk + 2 * f32_blk + 2 * const_bytes + (4 << 20)

    budget_cap = max(24 << 20, vmem_cap - (16 << 20))
    while bt > 1 and _vmem_need(bt) > budget_cap:
        bt -= 1
        while B % bt:
            bt -= 1
    vmem_limit = int(min(budget_cap, max(32 << 20, _vmem_need(bt))))

    grid = (B // bt,)
    # Contiguous dim-merge: pure metadata, no HBM pass, no dtype conversion.
    x2 = x.reshape(B, C, HW)

    out = pl.pallas_call(
        _cbam_kernel,
        out_shape=jax.ShapeDtypeStruct((B, C, HW), io_dtype),
        grid_spec=pltpu.PrefetchScalarGridSpec(
            num_scalar_prefetch=0,
            grid=grid,
            in_specs=[
                pl.BlockSpec((bt, C, HW), lambda i: (i, 0, 0)),     # x slab
                pl.BlockSpec((C, Cr), lambda i: (0, 0)),            # fc1 weight^T
                pl.BlockSpec((1, Cr), lambda i: (0, 0)),            # fc1 bias
                pl.BlockSpec((Cr, C), lambda i: (0, 0)),            # fc2 weight^T
                pl.BlockSpec((1, C), lambda i: (0, 0)),             # fc2 bias
                pl.BlockSpec((2 * HW, HW), lambda i: (0, 0)),       # SA conv (stacked)
                pl.BlockSpec((1, 1), lambda i: (0, 0)),             # SA conv bias
            ],
            out_specs=pl.BlockSpec((bt, C, HW), lambda i: (i, 0, 0)),
        ),
        compiler_params=pltpu.CompilerParams(
            dimension_semantics=("parallel",),
            vmem_limit_bytes=vmem_limit),
    )(x2, w1_t, b1r, w2_t, b2r, m_sa, b_sa2)

    return out.reshape(B, C, H, W)


# --------------------------------------------------------------------------
# Pure-JAX reference (matches the PyTorch CBAM module)
# --------------------------------------------------------------------------
def _reference(x, w1, b1, w2, b2, w_sa, b_sa):
    # Channel attention.
    avg = jnp.mean(x, axis=(2, 3))                       # (B, C)
    mx = jnp.max(x, axis=(2, 3))                         # (B, C)

    def mlp(p):
        return jnp.maximum(p @ w1.T + b1, 0.0) @ w2.T + b2

    ca = jax.nn.sigmoid(mlp(avg) + mlp(mx))              # (B, C)
    x1 = x * ca[:, :, None, None]

    # Spatial attention.
    avg_c = jnp.mean(x1, axis=1, keepdims=True)          # (B, 1, H, W)
    max_c = jnp.max(x1, axis=1, keepdims=True)           # (B, 1, H, W)
    inp = jnp.concatenate([avg_c, max_c], axis=1)        # (B, 2, H, W)
    conv = jax.lax.conv_general_dilated(
        inp, w_sa[None], window_strides=(1, 1), padding="SAME",
        dimension_numbers=("NCHW", "OIHW", "NCHW"))      # (B, 1, H, W)
    sa = jax.nn.sigmoid(conv + b_sa.reshape(1, 1, 1, 1))
    return x1 * sa


if __name__ == "__main__":
    B, C, H, W = 2, 64, 16, 16
    reduction_ratio = 16
    Cr = C // reduction_ratio                            # 4
    ks = 7

    key = jax.random.PRNGKey(0)
    kx, k1, k2, k3, k4, k5, k6 = jax.random.split(key, 7)

    x = jax.random.normal(kx, (B, C, H, W), dtype=jnp.float32)
    w1 = jax.random.normal(k1, (Cr, C), dtype=jnp.float32) * 0.1
    b1 = jax.random.normal(k2, (Cr,), dtype=jnp.float32) * 0.1
    w2 = jax.random.normal(k3, (C, Cr), dtype=jnp.float32) * 0.1
    b2 = jax.random.normal(k4, (C,), dtype=jnp.float32) * 0.1
    w_sa = jax.random.normal(k5, (2, ks, ks), dtype=jnp.float32) * 0.1
    b_sa = jax.random.normal(k6, (1,), dtype=jnp.float32) * 0.1

    ref = _reference(x, w1, b1, w2, b2, w_sa, b_sa)

    # f32 MXU constants: tight correctness check.
    out_f32 = jax.block_until_ready(
        cbam_forward(x, w1, b1, w2, b2, w_sa, b_sa, mxu_dtype=jnp.float32))
    assert out_f32.shape == (B, C, H, W)
    assert jnp.allclose(out_f32, ref, atol=1e-3, rtol=1e-3), "f32 mismatch vs reference"

    # bf16 MXU constants (default, VMEM/DMA-optimized): looser tolerance.
    out_bf16 = jax.block_until_ready(
        cbam_forward(x, w1, b1, w2, b2, w_sa, b_sa))
    assert out_bf16.shape == (B, C, H, W)
    assert jnp.allclose(out_bf16, ref, atol=5e-2, rtol=5e-2), "bf16 mismatch vs reference"

    print("KERNEL_OK")
</pallas_src>

<mosaic_0001>
module attributes {stable_mosaic.version = 11 : i64} {
  func.func @_cbam_kernel(%arg0: i32, %arg1: memref<1x64x256xf32, #tpu.memory_space<vmem>>, %arg2: memref<64x4xf32, #tpu.memory_space<vmem>>, %arg3: memref<1x4xf32, #tpu.memory_space<vmem>>, %arg4: memref<4x64xf32, #tpu.memory_space<vmem>>, %arg5: memref<1x64xf32, #tpu.memory_space<vmem>>, %arg6: memref<512x256xf32, #tpu.memory_space<vmem>>, %arg7: memref<1x1xf32, #tpu.memory_space<vmem>>, %arg8: memref<1x64x256xf32, #tpu.memory_space<vmem>>) attributes {dimension_semantics = [#tpu.dimension_semantics<parallel>], iteration_bounds = array<i64: 2>, scalar_prefetch = 0 : i64, scratch_operands = 0 : i64, tpu.core_type = #tpu.core_type<tc>, window_params = [{transform_indices = @transform_0, window_bounds = array<i64: 1, 64, 256>}, {pipeline_mode = #tpu.pipeline_mode<synchronous>, transform_indices = @transform_1, window_bounds = array<i64: 64, 4>}, {pipeline_mode = #tpu.pipeline_mode<synchronous>, transform_indices = @transform_2, window_bounds = array<i64: 1, 4>}, {pipeline_mode = #tpu.pipeline_mode<synchronous>, transform_indices = @transform_3, window_bounds = array<i64: 4, 64>}, {pipeline_mode = #tpu.pipeline_mode<synchronous>, transform_indices = @transform_4, window_bounds = array<i64: 1, 64>}, {pipeline_mode = #tpu.pipeline_mode<synchronous>, transform_indices = @transform_5, window_bounds = array<i64: 512, 256>}, {pipeline_mode = #tpu.pipeline_mode<synchronous>, transform_indices = @transform_6, window_bounds = array<i64: 1, 1>}, {transform_indices = @transform_7, window_bounds = array<i64: 1, 64, 256>}]} {
    %c0 = arith.constant 0 : index
    %c0_0 = arith.constant 0 : index
    %c0_1 = arith.constant 0 : index
    %0 = vector.load %arg1[%c0, %c0_0, %c0_1] : memref<1x64x256xf32, #tpu.memory_space<vmem>>, vector<1x64x256xf32>
    %cst = arith.constant dense<0.000000e+00> : vector<1x64xf32>
    %1 = vector.multi_reduction <add>, %0, %cst [2] : vector<1x64x256xf32> to vector<1x64xf32>
    %cst_2 = arith.constant 2.560000e+02 : f32
    %2 = vector.broadcast %cst_2 : f32 to vector<1x64xf32>
    %3 = arith.divf %1, %2 : vector<1x64xf32>
    %cst_3 = arith.constant dense<0xFF800000> : vector<1x64xf32>
    %4 = vector.multi_reduction <maximumf>, %0, %cst_3 [2] : vector<1x64x256xf32> to vector<1x64xf32>
    %5 = tpu.concatenate %3, %4 in 0 : vector<1x64xf32>, vector<1x64xf32> -> vector<2x64xf32>
    %c0_4 = arith.constant 0 : index
    %c0_5 = arith.constant 0 : index
    %6 = vector.load %arg2[%c0_4, %c0_5] : memref<64x4xf32, #tpu.memory_space<vmem>>, vector<64x4xf32>
    %cst_6 = arith.constant dense<0.000000e+00> : vector<2x4xf32>
    %7 = tpu.matmul %5, %6, %cst_6 {dimension_numbers = #tpu.dot_dimension_numbers<[1], [0], [0], [1], [0, 0, 1, 1], [], []>} : vector<2x64xf32>, vector<64x4xf32>, vector<2x4xf32> -> vector<2x4xf32>
    %c0_7 = arith.constant 0 : index
    %c0_8 = arith.constant 0 : index
    %8 = vector.load %arg3[%c0_7, %c0_8] : memref<1x4xf32, #tpu.memory_space<vmem>>, vector<1x4xf32>
    %9 = vector.broadcast %8 : vector<1x4xf32> to vector<2x4xf32>
    %10 = arith.addf %7, %9 : vector<2x4xf32>
    %cst_9 = arith.constant 0.000000e+00 : f32
    %11 = vector.broadcast %cst_9 : f32 to vector<2x4xf32>
    %12 = arith.maximumf %10, %11 : vector<2x4xf32>
    %c0_10 = arith.constant 0 : index
    %c0_11 = arith.constant 0 : index
    %13 = vector.load %arg4[%c0_10, %c0_11] : memref<4x64xf32, #tpu.memory_space<vmem>>, vector<4x64xf32>
    %cst_12 = arith.constant dense<0.000000e+00> : vector<2x64xf32>
    %14 = tpu.matmul %12, %13, %cst_12 {dimension_numbers = #tpu.dot_dimension_numbers<[1], [0], [0], [1], [0, 0, 1, 1], [], []>} : vector<2x4xf32>, vector<4x64xf32>, vector<2x64xf32> -> vector<2x64xf32>
    %c0_13 = arith.constant 0 : index
    %c0_14 = arith.constant 0 : index
    %15 = vector.load %arg5[%c0_13, %c0_14] : memref<1x64xf32, #tpu.memory_space<vmem>>, vector<1x64xf32>
    %16 = vector.broadcast %15 : vector<1x64xf32> to vector<2x64xf32>
    %17 = arith.addf %14, %16 : vector<2x64xf32>
    %18 = vector.extract_strided_slice %17 {offsets = [0, 0], sizes = [1, 64], strides = [1, 1]} : vector<2x64xf32> to vector<1x64xf32>
    %19 = vector.extract_strided_slice %17 {offsets = [1, 0], sizes = [1, 64], strides = [1, 1]} : vector<2x64xf32> to vector<1x64xf32>
    %20 = arith.addf %18, %19 : vector<1x64xf32>
    %21 = arith.negf %20 : vector<1x64xf32>
    %22 = math.exp %21 : vector<1x64xf32>
    %cst_15 = arith.constant 1.000000e+00 : f32
    %23 = vector.broadcast %cst_15 : f32 to vector<1x64xf32>
    %24 = arith.addf %23, %22 : vector<1x64xf32>
    %25 = arith.divf %23, %24 : vector<1x64xf32>
    %26 = vector.shape_cast %25 : vector<1x64xf32> to vector<1x64x1xf32>
    %27 = vector.broadcast %26 : vector<1x64x1xf32> to vector<1x64x256xf32>
    %28 = arith.mulf %0, %27 : vector<1x64x256xf32>
    %cst_16 = arith.constant dense<0.000000e+00> : vector<1x256xf32>
    %29 = vector.multi_reduction <add>, %28, %cst_16 [1] : vector<1x64x256xf32> to vector<1x256xf32>
    %cst_17 = arith.constant 6.400000e+01 : f32
    %30 = vector.broadcast %cst_17 : f32 to vector<1x256xf32>
    %31 = arith.divf %29, %30 : vector<1x256xf32>
    %cst_18 = arith.constant dense<0xFF800000> : vector<1x256xf32>
    %32 = vector.multi_reduction <maximumf>, %28, %cst_18 [1] : vector<1x64x256xf32> to vector<1x256xf32>
    %33 = tpu.concatenate %31, %32 in 1 : vector<1x256xf32>, vector<1x256xf32> -> vector<1x512xf32>
    %c0_19 = arith.constant 0 : index
    %c0_20 = arith.constant 0 : index
    %34 = vector.load %arg6[%c0_19, %c0_20] : memref<512x256xf32, #tpu.memory_space<vmem>>, vector<512x256xf32>
    %cst_21 = arith.constant dense<0.000000e+00> : vector<1x256xf32>
    %35 = tpu.matmul %33, %34, %cst_21 {dimension_numbers = #tpu.dot_dimension_numbers<[1], [0], [0], [1], [0, 0, 1, 1], [], []>} : vector<1x512xf32>, vector<512x256xf32>, vector<1x256xf32> -> vector<1x256xf32>
    %c0_22 = arith.constant 0 : index
    %c0_23 = arith.constant 0 : index
    %36 = vector.load %arg7[%c0_22, %c0_23] : memref<1x1xf32, #tpu.memory_space<vmem>>, vector<1x1xf32>
    %37 = vector.broadcast %36 : vector<1x1xf32> to vector<1x256xf32>
    %38 = arith.addf %35, %37 : vector<1x256xf32>
    %39 = arith.negf %38 : vector<1x256xf32>
    %40 = math.exp %39 : vector<1x256xf32>
    %cst_24 = arith.constant 1.000000e+00 : f32
    %41 = vector.broadcast %cst_24 : f32 to vector<1x256xf32>
    %42 = arith.addf %41, %40 : vector<1x256xf32>
    %43 = arith.divf %41, %42 : vector<1x256xf32>
    %44 = vector.shape_cast %43 : vector<1x256xf32> to vector<1x1x256xf32>
    %45 = vector.broadcast %44 : vector<1x1x256xf32> to vector<1x64x256xf32>
    %46 = arith.mulf %28, %45 : vector<1x64x256xf32>
    %c0_25 = arith.constant 0 : index
    %c0_26 = arith.constant 0 : index
    %c0_27 = arith.constant 0 : index
    %47 = vector.load %arg8[%c0_25, %c0_26, %c0_27] : memref<1x64x256xf32, #tpu.memory_space<vmem>>, vector<1x64x256xf32>
    tpu.vector_store %arg8[%c0_25, %c0_26, %c0_27], %46 {strides = array<i32>} : memref<1x64x256xf32, #tpu.memory_space<vmem>>, vector<1x64x256xf32>,
    return
  }
  func.func @transform_0(%arg0: i32) -> (i32, i32, i32) {
    %c0_i32 = arith.constant 0 : i32
    %c0_i32_0 = arith.constant 0 : i32
    %c0_i32_1 = arith.constant 0 : i32
    return %arg0, %c0_i32, %c0_i32_0 : i32, i32, i32
  }
  func.func @transform_1(%arg0: i32) -> (i32, i32) {
    %c0_i32 = arith.constant 0 : i32
    %c0_i32_0 = arith.constant 0 : i32
    %c0_i32_1 = arith.constant 0 : i32
    return %c0_i32, %c0_i32_0 : i32, i32
  }
  func.func @transform_2(%arg0: i32) -> (i32, i32) {
    %c0_i32 = arith.constant 0 : i32
    %c0_i32_0 = arith.constant 0 : i32
    %c0_i32_1 = arith.constant 0 : i32
    return %c0_i32, %c0_i32_0 : i32, i32
  }
  func.func @transform_3(%arg0: i32) -> (i32, i32) {
    %c0_i32 = arith.constant 0 : i32
    %c0_i32_0 = arith.constant 0 : i32
    %c0_i32_1 = arith.constant 0 : i32
    return %c0_i32, %c0_i32_0 : i32, i32
  }
  func.func @transform_4(%arg0: i32) -> (i32, i32) {
    %c0_i32 = arith.constant 0 : i32
    %c0_i32_0 = arith.constant 0 : i32
    %c0_i32_1 = arith.constant 0 : i32
    return %c0_i32, %c0_i32_0 : i32, i32
  }
  func.func @transform_5(%arg0: i32) -> (i32, i32) {
    %c0_i32 = arith.constant 0 : i32
    %c0_i32_0 = arith.constant 0 : i32
    %c0_i32_1 = arith.constant 0 : i32
    return %c0_i32, %c0_i32_0 : i32, i32
  }
  func.func @transform_6(%arg0: i32) -> (i32, i32) {
    %c0_i32 = arith.constant 0 : i32
    %c0_i32_0 = arith.constant 0 : i32
    %c0_i32_1 = arith.constant 0 : i32
    return %c0_i32, %c0_i32_0 : i32, i32
  }
  func.func @transform_7(%arg0: i32) -> (i32, i32, i32) {
    %c0_i32 = arith.constant 0 : i32
    %c0_i32_0 = arith.constant 0 : i32
    %c0_i32_1 = arith.constant 0 : i32
    return %arg0, %c0_i32, %c0_i32_0 : i32, i32, i32
  }
}

</mosaic_0001>

<llo_original>
// kernel: squeeze.2
$region0: #{squeeze.2}
  %s0 = inlined_call_operand.vmem [shape: f32[7,7], index: 0, kind: input, shape index: {}]
  %s1 = inlined_call_operand.vmem [shape: f32[49], index: 1, kind: output, shape index: {}]
  $region1: #{squeeze.2} parent=0
    #allocation0 [shape = 'u8[4096]{0}', space=vmem, size = 0x1000, scoped, tag = 'scoped mem for output reshape']
    %v2 = vld [vmem:[%s0] sm:$0x1]
    %vm3 = vcmask 56320
    %4 = vst.msk [vmem:[#allocation0] sm:$0x1] %vm3, %v2
    %s5 = scalar_lea.vmem %s0, 6
    %v6 = vld [vmem:[%s5] sm:$0x1]
    %7 = vrot.lane.b32.xlu0 %v6, 42
    %v8 = vpop.permute.xlu0 %7
    %vm9 = vcmask 400720
    %10 = vst.msk [vmem:[#allocation0] sm:$0x1] %vm9, %v8
    %s11 = scalar_lea.vmem %s0, 5
    %v12 = vld [vmem:[%s11] sm:$0x1]
    %13 = vrot.lane.b32.xlu0 %v12, 35
    %v14 = vpop.permute.xlu0 %13
    %vm15 = vcmask 343320
    %16 = vst.msk [vmem:[#allocation0] sm:$0x1] %vm15, %v14
    %s17 = scalar_lea.vmem %s0, 4
    %v18 = vld [vmem:[%s17] sm:$0x1]
    %19 = vrot.lane.b32.xlu0 %v18, 28
    %v20 = vpop.permute.xlu0 %19
    %vm21 = vcmask 285920
    %22 = vst.msk [vmem:[#allocation0] sm:$0x1] %vm21, %v20
    %s23 = scalar_lea.vmem %s0, 3
    %v24 = vld [vmem:[%s23] sm:$0x1]
    %25 = vrot.lane.b32.xlu0 %v24, 21
    %v26 = vpop.permute.xlu0 %25
    %vm27 = vcmask 228520
    %28 = vst.msk [vmem:[#allocation0] sm:$0x1] %vm27, %v26
    %s29 = scalar_lea.vmem %s0, 2
    %v30 = vld [vmem:[%s29] sm:$0x1]
    %31 = vrot.lane.b32.xlu0 %v30, 14
    %v32 = vpop.permute.xlu0 %31
    %vm33 = vcmask 171120
    %34 = vst.msk [vmem:[#allocation0] sm:$0x1] %vm33, %v32
    %s35 = scalar_lea.vmem %s0, 1
    %v36 = vld [vmem:[%s35] sm:$0x1]
    %37 = vrot.lane.b32.xlu0 %v36, 7
    %v38 = vpop.permute.xlu0 %37
    %vm39 = vcmask 113720
    %40 = vst.msk [vmem:[#allocation0] sm:$0x1] %vm39, %v38
    %s42 = sshllo.u32 0, 1
    %v44 = vld [vmem:[#allocation0] sm:%s42]
    %s45 = sshllo.u32 0, 1
    %46 = vst [vmem:[%s1] sm:%s45] %v44

// kernel: cbam_forward.1
$region0: #{cbam_forward.1}
  #allocation0 [shape = 'u32[]', space=smem, size = 0x4, offset = 0x4, fixed_abs, tag = 'smem constant byte address 0x4 - core index']
  #allocation1 [shape = 'u32[144,128]{1,0:T(1,128)}', space=vmem, size = 0x12000, scoped, tag = 'internal scratch']
  #allocation2 [shape = 'f32[1,1]{1,0:T(1,128)S(1)}', space=vmem, size = 0x200, scoped, tag = 'scoped memory for cbam_forward.1']
  %s0 = inlined_call_operand.vmem [shape: f32[2,64,256], index: 0, kind: input, shape index: {}]
  %s1 = inlined_call_operand.vmem [shape: f32[64,4], index: 1, kind: input, shape index: {}]
  %s2 = inlined_call_operand.vmem [shape: f32[1,4], index: 2, kind: input, shape index: {}]
  %s3 = inlined_call_operand.vmem [shape: f32[4,64], index: 3, kind: input, shape index: {}]
  %s4 = inlined_call_operand.vmem [shape: f32[1,64], index: 4, kind: input, shape index: {}]
  %s5 = inlined_call_operand.vmem [shape: f32[512,256], index: 5, kind: input, shape index: {}]
  %s6 = inlined_call_operand.<no memory space> [shape: f32[1,1], index: 6, kind: input, shape index: {}]
  %s7 = inlined_call_operand.vmem [shape: f32[2,64,256], index: 7, kind: output, shape index: {}]
  %s8 = sld [smem:[#allocation0]]
  $region61: #{cbam_forward.1} parent=0
    _
  %s10 = ssub.s32 1, %s8
  %s11 = scalar_select 0, %s10, %s8
  %v12 = vstv %s6
  %13 = vst [vmem:[#allocation2] sm:$0x1] %v12
  loop: start=0, step=1, limit=4
  $region2: #{cbam_forward.1} parent=0 // loop_pre_header
    _
  $region3: #{cbam_forward.1} parent=0 // loop_header
    %s15 = sphi 0, %s19
    %p16 = scmp.ge.s32.totalorder %s15, 4
    %s25 = sphi 0, %s27
    %s28 = sphi 0, %s25
    %s29 = sphi 0, %s28
    %s45 = sphi 0, %s29
    %s49 = sphi 0, %s49
    %s51 = sphi 0, %s49
    %s52 = sphi 0, %s51
    %s66 = sphi 0, %s52
    %s70 = sphi 0, %s70
    %s72 = sphi 0, %s70
    %s73 = sphi 0, %s72
    %s87 = sphi 0, %s73
    %s91 = sphi 0, %s91
    %s93 = sphi 0, %s91
    %s94 = sphi 0, %s93
    %s108 = sphi 0, %s94
    %s112 = sphi 0, %s112
    %s114 = sphi 0, %s112
    %s115 = sphi 0, %s114
    %s129 = sphi 0, %s115
    %s133 = sphi 0, %s133
    %s135 = sphi 0, %s133
    %s136 = sphi 0, %s135
    %s150 = sphi 0, %s136
    %s154 = sphi 0, %s154
    %s156 = sphi 0, %s154
    %s157 = sphi 0, %s156
    %s171 = sphi 0, %s157
    %s177 = sphi 0, %s179
    %s180 = sphi 0, %s177
    %s181 = sphi 0, %s180
    %s197 = sphi 0, %s181
  $region4: #{cbam_forward.1} parent=0 // loop_header_branch
    %18 = sbr.rel (%p16) target = $region8
  $region5: #{cbam_forward.1} parent=0 // loop_body
    %s20 = ssub.s32 %s15, 1
    %s21 = ssub.s32 %s15, 2
    %s22 = sadd.s32 %s15, 1
    %s23 = ssub.s32 %s15, %s22
    %p24 = scmp.eq.s32.totalorder %s23, 0
    %s26 = sadd.s32 %s25, 1
    %s27 = scalar_select %p24, %s25, %s26
    %p30 = pneg %p24
    %p31 = scmp.eq.s32.totalorder %s15, 1
    %p32 = por %p30, %p31
    %p33 = scmp.ne.s32.totalorder %s25, %s28
    %p34 = scmp.eq.s32.totalorder %s15, 0
    %p35 = por %p33, %p34
    %p36 = scmp.ne.s32.totalorder %s25, %s28
    %p37 = scmp.eq.s32.totalorder %s20, 1
    %p38 = por %p36, %p37
    %p39 = scmp.ne.s32.totalorder %s28, %s29
    %p40 = scmp.eq.s32.totalorder %s20, 0
    %p41 = por %p39, %p40
    %p42 = scmp.ne.s32.totalorder %s28, %s29
    %p43 = scmp.eq.s32.totalorder %s21, 1
    %p44 = por %p42, %p43
    %p46 = scmp.ne.s32.totalorder %s29, %s45
    %p47 = scmp.eq.s32.totalorder %s21, 0
    %p48 = por %p46, %p47
    %s50 = sadd.s32 %s49, 1
    %p53 = scmp.eq.s32.totalorder %s15, 1
    %p54 = scmp.ne.s32.totalorder %s49, %s51
    %p55 = scmp.eq.s32.totalorder %s15, 0
    %p56 = por %p54, %p55
    %p57 = scmp.ne.s32.totalorder %s49, %s51
    %p58 = scmp.eq.s32.totalorder %s20, 1
    %p59 = por %p57, %p58
    %p60 = scmp.ne.s32.totalorder %s51, %s52
    %p61 = scmp.eq.s32.totalorder %s20, 0
    %p62 = por %p60, %p61
    %p63 = scmp.ne.s32.totalorder %s51, %s52
    %p64 = scmp.eq.s32.totalorder %s21, 1
    %p65 = por %p63, %p64
    %p67 = scmp.ne.s32.totalorder %s52, %s66
    %p68 = scmp.eq.s32.totalorder %s21, 0
    %p69 = por %p67, %p68
    %s71 = sadd.s32 %s70, 1
    %p74 = scmp.eq.s32.totalorder %s15, 1
    %p75 = scmp.ne.s32.totalorder %s70, %s72
    %p76 = scmp.eq.s32.totalorder %s15, 0
    %p77 = por %p75, %p76
    %p78 = scmp.ne.s32.totalorder %s70, %s72
    %p79 = scmp.eq.s32.totalorder %s20, 1
    %p80 = por %p78, %p79
    %p81 = scmp.ne.s32.totalorder %s72, %s73
    %p82 = scmp.eq.s32.totalorder %s20, 0
    %p83 = por %p81, %p82
    %p84 = scmp.ne.s32.totalorder %s72, %s73
    %p85 = scmp.eq.s32.totalorder %s21, 1
    %p86 = por %p84, %p85
    %p88 = scmp.ne.s32.totalorder %s73, %s87
    %p89 = scmp.eq.s32.totalorder %s21, 0
    %p90 = por %p88, %p89
    %s92 = sadd.s32 %s91, 1
    %p95 = scmp.eq.s32.totalorder %s15, 1
    %p96 = scmp.ne.s32.totalorder %s91, %s93
    %p97 = scmp.eq.s32.totalorder %s15, 0
    %p98 = por %p96, %p97
    %p99 = scmp.ne.s32.totalorder %s91, %s93
    %p100 = scmp.eq.s32.totalorder %s20, 1
    %p101 = por %p99, %p100
    %p102 = scmp.ne.s32.totalorder %s93, %s94
    %p103 = scmp.eq.s32.totalorder %s20, 0
    %p104 = por %p102, %p103
    %p105 = scmp.ne.s32.totalorder %s93, %s94
    %p106 = scmp.eq.s32.totalorder %s21, 1
    %p107 = por %p105, %p106
    %p109 = scmp.ne.s32.totalorder %s94, %s108
    %p110 = scmp.eq.s32.totalorder %s21, 0
    %p111 = por %p109, %p110
    %s113 = sadd.s32 %s112, 1
    %p116 = scmp.eq.s32.totalorder %s15, 1
    %p117 = scmp.ne.s32.totalorder %s112, %s114
    %p118 = scmp.eq.s32.totalorder %s15, 0
    %p119 = por %p117, %p118
    %p120 = scmp.ne.s32.totalorder %s112, %s114
    %p121 = scmp.eq.s32.totalorder %s20, 1
    %p122 = por %p120, %p121
    %p123 = scmp.ne.s32.totalorder %s114, %s115
    %p124 = scmp.eq.s32.totalorder %s20, 0
    %p125 = por %p123, %p124
    %p126 = scmp.ne.s32.totalorder %s114, %s115
    %p127 = scmp.eq.s32.totalorder %s21, 1
    %p128 = por %p126, %p127
    %p130 = scmp.ne.s32.totalorder %s115, %s129
    %p131 = scmp.eq.s32.totalorder %s21, 0
    %p132 = por %p130, %p131
    %s134 = sadd.s32 %s133, 1
    %p137 = scmp.eq.s32.totalorder %s15, 1
    %p138 = scmp.ne.s32.totalorder %s133, %s135
    %p139 = scmp.eq.s32.totalorder %s15, 0
    %p140 = por %p138, %p139
    %p141 = scmp.ne.s32.totalorder %s133, %s135
    %p142 = scmp.eq.s32.totalorder %s20, 1
    %p143 = por %p141, %p142
    %p144 = scmp.ne.s32.totalorder %s135, %s136
    %p145 = scmp.eq.s32.totalorder %s20, 0
    %p146 = por %p144, %p145
    %p147 = scmp.ne.s32.totalorder %s135, %s136
    %p148 = scmp.eq.s32.totalorder %s21, 1
    %p149 = por %p147, %p148
    %p151 = scmp.ne.s32.totalorder %s136, %s150
    %p152 = scmp.eq.s32.totalorder %s21, 0
    %p153 = por %p151, %p152
    %s155 = sadd.s32 %s154, 1
    %p158 = scmp.eq.s32.totalorder %s15, 1
    %p159 = scmp.ne.s32.totalorder %s154, %s156
    %p160 = scmp.eq.s32.totalorder %s15, 0
    %p161 = por %p159, %p160
    %p162 = scmp.ne.s32.totalorder %s154, %s156
    %p163 = scmp.eq.s32.totalorder %s20, 1
    %p164 = por %p162, %p163
    %p165 = scmp.ne.s32.totalorder %s156, %s157
    %p166 = scmp.eq.s32.totalorder %s20, 0
    %p167 = por %p165, %p166
    %p168 = scmp.ne.s32.totalorder %s156, %s157
    %p169 = scmp.eq.s32.totalorder %s21, 1
    %p170 = por %p168, %p169
    %p172 = scmp.ne.s32.totalorder %s157, %s171
    %p173 = scmp.eq.s32.totalorder %s21, 0
    %p174 = por %p172, %p173
    %s175 = ssub.s32 %s15, %s22
    %p176 = scmp.eq.s32.totalorder %s175, 0
    %s178 = sadd.s32 %s177, 1
    %s179 = scalar_select %p176, %s177, %s178
    %p182 = pneg %p176
    %p183 = scmp.eq.s32.totalorder %s15, 1
    %p184 = por %p182, %p183
    %p185 = scmp.ne.s32.totalorder %s177, %s180
    %p186 = scmp.eq.s32.totalorder %s15, 0
    %p187 = por %p185, %p186
    %p188 = scmp.ne.s32.totalorder %s177, %s180
    %p189 = scmp.eq.s32.totalorder %s20, 1
    %p190 = por %p188, %p189
    %p191 = scmp.ne.s32.totalorder %s180, %s181
    %p192 = scmp.eq.s32.totalorder %s20, 0
    %p193 = por %p191, %p192
    %p194 = scmp.ne.s32.totalorder %s180, %s181
    %p195 = scmp.eq.s32.totalorder %s21, 1
    %p196 = por %p194, %p195
    %p198 = scmp.ne.s32.totalorder %s181, %s197
    %p199 = scmp.eq.s32.totalorder %s21, 0
    %p200 = por %p198, %p199
    %p201 = scmp.le.s32.totalorder 1, %s15
    %p202 = scmp.lt.s32.totalorder %s15, 3
    %p203 = pnand %p201, %p202
    %p204 = pneg %p203
    // Predicated region
    $region9: #{cbam_forward.1} parent=5 // pred_check
      _
    $region10: #{cbam_forward.1} parent=5 // pred_check_branch
      %206 = sbr.rel (%p203) target = $region12
    $region11: #{cbam_forward.1} parent=5 // pred_region
      %s207 = ssub.s32 %s15, 1
      // Predicated region
      $region13: #{cbam_forward.1} parent=11 // pred_check
        %p208 = pneg %p62
      $region14: #{cbam_forward.1} parent=11 // pred_check_branch
        %210 = sbr.rel (%p208) target = $region16
      $region15: #{cbam_forward.1} parent=11 // pred_region
        _
      $region16: #{cbam_forward.1} parent=11 // pred_fallthru
        _
      // Predicated region
      $region17: #{cbam_forward.1} parent=11 // pred_check
        %p211 = pneg %p83
      $region18: #{cbam_forward.1} parent=11 // pred_check_branch
        %213 = sbr.rel (%p211) target = $region20
      $region19: #{cbam_forward.1} parent=11 // pred_region
        _
      $region20: #{cbam_forward.1} parent=11 // pred_fallthru
        _
      // Predicated region
      $region21: #{cbam_forward.1} parent=11 // pred_check
        %p214 = pneg %p104
      $region22: #{cbam_forward.1} parent=11 // pred_check_branch
        %216 = sbr.rel (%p214) target = $region24
      $region23: #{cbam_forward.1} parent=11 // pred_region
        _
      $region24: #{cbam_forward.1} parent=11 // pred_fallthru
        _
      // Predicated region
      $region25: #{cbam_forward.1} parent=11 // pred_check
        %p217 = pneg %p125
      $region26: #{cbam_forward.1} parent=11 // pred_check_branch
        %219 = sbr.rel (%p217) target = $region28
      $region27: #{cbam_forward.1} parent=11 // pred_region
        _
      $region28: #{cbam_forward.1} parent=11 // pred_fallthru
        _
      // Predicated region
      $region29: #{cbam_forward.1} parent=11 // pred_check
        %p220 = pneg %p146
      $region30: #{cbam_forward.1} parent=11 // pred_check_branch
        %222 = sbr.rel (%p220) target = $region32
      $region31: #{cbam_forward.1} parent=11 // pred_region
        _
      $region32: #{cbam_forward.1} parent=11 // pred_fallthru
        _
      // Predicated region
      $region33: #{cbam_forward.1} parent=11 // pred_check
        %p223 = pneg %p167
      $region34: #{cbam_forward.1} parent=11 // pred_check_branch
        %225 = sbr.rel (%p223) target = $region36
      $region35: #{cbam_forward.1} parent=11 // pred_region
        _
      $region36: #{cbam_forward.1} parent=11 // pred_fallthru
        _
    $region12: #{cbam_forward.1} parent=5 // pred_fallthru
      _
    %p226 = scmp.lt.s32.totalorder %s15, 2
    // Predicated region
    $region37: #{cbam_forward.1} parent=5 // pred_check
      %p227 = pneg %p226
    $region38: #{cbam_forward.1} parent=5 // pred_check_branch
      %229 = sbr.rel (%p227) target = $region40
    $region39: #{cbam_forward.1} parent=5 // pred_region
      // Predicated region
      $region41: #{cbam_forward.1} parent=39 // pred_check
        %p230 = pneg %p35
      $region42: #{cbam_forward.1} parent=39 // pred_check_branch
        %232 = sbr.rel (%p230) target = $region44
      $region43: #{cbam_forward.1} parent=39 // pred_region
        %p233 = scmp.lt.s32.totalorder %s15, 1
        %s234 = scalar_select %p233, %s15, 1
        %s235 = smul.addr %s234, 16
        %s236 = smul.addr %s235, 8
        %s237 = scalar_lea.vmem %s0, %s236
      $region44: #{cbam_forward.1} parent=39 // pred_fallthru
        _
    $region40: #{cbam_forward.1} parent=5 // pred_fallthru
      _
    %p238 = scmp.le.s32.totalorder 1, %s15
    %p239 = scmp.lt.s32.totalorder %s15, 3
    %p240 = pnand %p238, %p239
    %p241 = pneg %p240
    // Predicated region
    $region45: #{cbam_forward.1} parent=5 // pred_check
      _
    $region46: #{cbam_forward.1} parent=5 // pred_check_branch
      %243 = sbr.rel (%p240) target = $region48
    $region47: #{cbam_forward.1} parent=5 // pred_region
      %s244 = ssub.s32 %s15, 1
      %p245 = scmp.lt.s32.totalorder %s20, 1
      %s246 = scalar_select %p245, %s20, 1
      %s247 = smul.addr %s246, 16
      %s248 = smul.addr %s247, 8
      %s249 = scalar_lea.vmem %s0, %s248
      %p250 = pneg %p41
      %p251 = pneg %p38
      %p252 = pneg %p62
      %p253 = pneg %p59
      %p254 = pneg %p83
      %p255 = pneg %p80
      %p256 = pneg %p104
      %p257 = pneg %p101
      %p258 = pneg %p125
      %p259 = pneg %p122
      %p260 = pneg %p146
      %p261 = pneg %p143
      %p262 = pneg %p167
      %p263 = pneg %p164
      %p264 = pneg %p193
      %p265 = pneg %p190
      %p266 = scmp.lt.s32.totalorder %s20, 1
      %s267 = scalar_select %p266, %s20, 1
      %s268 = smul.addr %s267, 16
      %s269 = smul.addr %s268, 8
      %s270 = scalar_lea.vmem %s7, %s269
      %p271 = scmp.lt.s32.totalorder %s20, 1
      %s272 = scalar_select %p271, %s20, 1
      %s273 = smul.addr %s272, 16
      %s274 = smul.addr %s273, 8
      %s275 = scalar_lea.vmem %s0, %s274
      %p276 = scmp.lt.s32.totalorder %s20, 1
      %s277 = scalar_select %p276, %s20, 1
      %s278 = smul.addr %s277, 16
      %s279 = smul.addr %s278, 8
      %s280 = scalar_lea.vmem %s7, %s279
      %v281 = vld [vmem:[%s275] sm:$0xff]
      %v282 = vld [vmem:[%s275 + $0x8] sm:$0xff]
      %v283 = vld [vmem:[%s275 + $0x10] sm:$0xff]
      %v284 = vld [vmem:[%s275 + $0x18] sm:$0xff]
      %v285 = vld [vmem:[%s275 + $0x20] sm:$0xff]
      %v286 = vld [vmem:[%s275 + $0x28] sm:$0xff]
      %v287 = vld [vmem:[%s275 + $0x30] sm:$0xff]
      %v288 = vld [vmem:[%s275 + $0x38] sm:$0xff]
      %v289 = vld [vmem:[%s275 + $0x40] sm:$0xff]
      %v290 = vld [vmem:[%s275 + $0x48] sm:$0xff]
      %v291 = vld [vmem:[%s275 + $0x50] sm:$0xff]
      %v292 = vld [vmem:[%s275 + $0x58] sm:$0xff]
      %v293 = vld [vmem:[%s275 + $0x60] sm:$0xff]
      %v294 = vld [vmem:[%s275 + $0x68] sm:$0xff]
      %v295 = vld [vmem:[%s275 + $0x70] sm:$0xff]
      %v296 = vld [vmem:[%s275 + $0x78] sm:$0xff]
      %v297 = vadd.f32 %v281, %v282
      %298 = vadd.xlane.f32.xlu0 %v297
      %v299 = vpop.xlane.xlu0 %298
      %v300 = vadd.f32 %v283, %v284
      %301 = vadd.xlane.f32.xlu0 %v300
      %v302 = vpop.xlane.xlu0 %301
      %v303 = vadd.f32 %v285, %v286
      %304 = vadd.xlane.f32.xlu0 %v303
      %v305 = vpop.xlane.xlu0 %304
      %v306 = vadd.f32 %v287, %v288
      %307 = vadd.xlane.f32.xlu0 %v306
      %v308 = vpop.xlane.xlu0 %307
      %v309 = vadd.f32 %v289, %v290
      %310 = vadd.xlane.f32.xlu0 %v309
      %v311 = vpop.xlane.xlu0 %310
      %v312 = vadd.f32 %v291, %v292
      %313 = vadd.xlane.f32.xlu0 %v312
      %v314 = vpop.xlane.xlu0 %313
      %v315 = vadd.f32 %v293, %v294
      %316 = vadd.xlane.f32.xlu0 %v315
      %v317 = vpop.xlane.xlu0 %316
      %v318 = vadd.f32 %v295, %v296
      %319 = vadd.xlane.f32.xlu0 %v318
      %v320 = vpop.xlane.xlu0 %319
      %v321 = vrcp.pop 256.0
      %v322 = vmul.f32 %v299, %v321
      %v323 = vmul.f32 %v302, %v321
      %v324 = vmul.f32 %v305, %v321
      %v325 = vmul.f32 %v308, %v321
      %v326 = vmul.f32 %v311, %v321
      %v327 = vmul.f32 %v314, %v321
      %v328 = vmul.f32 %v317, %v321
      %v329 = vmul.f32 %v320, %v321
      %v330 = vmax.f32 %v281, %v282
      %331 = vmax.xlane.f32.xlu0 %v330
      %v332 = vpop.xlane.xlu0 %331
      %v333 = vmax.f32 %v283, %v284
      %334 = vmax.xlane.f32.xlu0 %v333
      %v335 = vpop.xlane.xlu0 %334
      %v336 = vmax.f32 %v285, %v286
      %337 = vmax.xlane.f32.xlu0 %v336
      %v338 = vpop.xlane.xlu0 %337
      %v339 = vmax.f32 %v287, %v288
      %340 = vmax.xlane.f32.xlu0 %v339
      %v341 = vpop.xlane.xlu0 %340
      %v342 = vmax.f32 %v289, %v290
      %343 = vmax.xlane.f32.xlu0 %v342
      %v344 = vpop.xlane.xlu0 %343
      %v345 = vmax.f32 %v291, %v292
      %346 = vmax.xlane.f32.xlu0 %v345
      %v347 = vpop.xlane.xlu0 %346
      %v348 = vmax.f32 %v293, %v294
      %349 = vmax.xlane.f32.xlu0 %v348
      %v350 = vpop.xlane.xlu0 %349
      %v351 = vmax.f32 %v295, %v296
      %352 = vmax.xlane.f32.xlu0 %v351
      %v353 = vpop.xlane.xlu0 %352
      %v362 = vlaneseq
      %v363 = vand.u32 %v362, 127
      %v364 = vlaneseq
      %v365 = vshrl.u32 %v364, 7
      %v366 = vsub.s32 %v363, %v365
      %v367 = vrot.slane %v322, %v366
      %v368 = vadd.s32 %v363, 4294967288
      %v369 = vlaneseq
      %v370 = vshrl.u32 %v369, 7
      %v371 = vsub.s32 %v368, %v370
      %v372 = vrot.slane %v323, %v371
      %vm373 = vcmask 130112
      %v374 = vsel %vm373, %v372, %v367
      %v375 = vadd.s32 %v363, 4294967280
      %v376 = vlaneseq
      %v377 = vshrl.u32 %v376, 7
      %v378 = vsub.s32 %v375, %v377
      %v379 = vrot.slane %v324, %v378
      %vm380 = vcmask 195712
      %v381 = vsel %vm380, %v379, %v374
      %v382 = vadd.s32 %v363, 4294967272
      %v383 = vlaneseq
      %v384 = vshrl.u32 %v383, 7
      %v385 = vsub.s32 %v382, %v384
      %v386 = vrot.slane %v325, %v385
      %vm387 = vcmask 261312
      %v388 = vsel %vm387, %v386, %v381
      %v389 = vadd.s32 %v363, 4294967264
      %v390 = vlaneseq
      %v391 = vshrl.u32 %v390, 7
      %v392 = vsub.s32 %v389, %v391
      %v393 = vrot.slane %v326, %v392
      %vm394 = vcmask 326912
      %v395 = vsel %vm394, %v393, %v388
      %v396 = vadd.s32 %v363, 4294967256
      %v397 = vlaneseq
      %v398 = vshrl.u32 %v397, 7
      %v399 = vsub.s32 %v396, %v398
      %v400 = vrot.slane %v327, %v399
      %vm401 = vcmask 392512
      %v402 = vsel %vm401, %v400, %v395
      %v403 = vadd.s32 %v363, 4294967248
      %v404 = vlaneseq
      %v405 = vshrl.u32 %v404, 7
      %v406 = vsub.s32 %v403, %v405
      %v407 = vrot.slane %v328, %v406
      %vm408 = vcmask 458112
      %v409 = vsel %vm408, %v407, %v402
      %v410 = vadd.s32 %v363, 4294967240
      %v411 = vlaneseq
      %v412 = vshrl.u32 %v411, 7
      %v413 = vsub.s32 %v410, %v412
      %v414 = vrot.slane %v329, %v413
      %vm415 = vcmask 523712
      %v416 = vsel %vm415, %v414, %v409
      %v426 = vlaneseq
      %v427 = vshrl.u32 %v426, 7
      %v428 = vsub.s32 %v363, %v427
      %v429 = vrot.slane %v332, %v428
      %v430 = vlaneseq
      %v431 = vshrl.u32 %v430, 7
      %v432 = vsub.s32 %v368, %v431
      %v433 = vrot.slane %v335, %v432
      %v434 = vsel %vm373, %v433, %v429
      %v435 = vlaneseq
      %v436 = vshrl.u32 %v435, 7
      %v437 = vsub.s32 %v375, %v436
      %v438 = vrot.slane %v338, %v437
      %v439 = vsel %vm380, %v438, %v434
      %v440 = vlaneseq
      %v441 = vshrl.u32 %v440, 7
      %v442 = vsub.s32 %v382, %v441
      %v443 = vrot.slane %v341, %v442
      %v444 = vsel %vm387, %v443, %v439
      %v445 = vlaneseq
      %v446 = vshrl.u32 %v445, 7
      %v447 = vsub.s32 %v389, %v446
      %v448 = vrot.slane %v344, %v447
      %v449 = vsel %vm394, %v448, %v444
      %v450 = vlaneseq
      %v451 = vshrl.u32 %v450, 7
      %v452 = vsub.s32 %v396, %v451
      %v453 = vrot.slane %v347, %v452
      %v454 = vsel %vm401, %v453, %v449
      %v455 = vlaneseq
      %v456 = vshrl.u32 %v455, 7
      %v457 = vsub.s32 %v403, %v456
      %v458 = vrot.slane %v350, %v457
      %v459 = vsel %vm408, %v458, %v454
      %v460 = vlaneseq
      %v461 = vshrl.u32 %v460, 7
      %v462 = vsub.s32 %v410, %v461
      %v463 = vrot.slane %v353, %v462
      %v464 = vsel %vm415, %v463, %v459
      %vm466 = vcmask 1040384
      %v467 = vsel %vm466, %v416, %v464
      %v468 = vld [vmem:[%s1] sm:$0xff]
      %v469 = vld [vmem:[%s1 + $0x8] sm:$0xff]
      %v470 = vld [vmem:[%s1 + $0x10] sm:$0xff]
      %v471 = vld [vmem:[%s1 + $0x18] sm:$0xff]
      %v472 = vld [vmem:[%s1 + $0x20] sm:$0xff]
      %v473 = vld [vmem:[%s1 + $0x28] sm:$0xff]
      %v474 = vld [vmem:[%s1 + $0x30] sm:$0xff]
      %v475 = vld [vmem:[%s1 + $0x38] sm:$0xff]
      %v476 = vld [vmem:[%s2] sm:$0x1]
      %v478 = vlaneseq
      %v479 = vshrl.u32 %v478, 7
      %v480 = vsub.s32 0, %v479
      %v481 = vrot.slane %v476, %v480
      %vm483 = vcmask 523264
      %v485 = vsel %vm483, %v467, 0
      %487 = vmatprep.subr.mxu0 0.0
      %488 = vmatpush1.msra.mxu0 %v468
      %489 = vmatprep.subr.mxu0 0.0
      %490 = vmatpush1.msra.mxu0 %v469
      %491 = vmatprep.subr.mxu0 0.0
      %492 = vmatpush1.msra.mxu0 %v470
      %493 = vmatprep.subr.mxu0 0.0
      %494 = vmatpush1.msra.mxu0 %v471
      %495 = vmatprep.subr.mxu0 0.0
      %496 = vmatpush1.msra.mxu0 %v472
      %497 = vmatprep.subr.mxu0 0.0
      %498 = vmatpush1.msra.mxu0 %v473
      %499 = vmatprep.subr.mxu0 0.0
      %500 = vmatpush1.msra.mxu0 %v474
      %501 = vmatprep.subr.mxu0 0.0
      %502 = vmatpush1.msra.mxu0 %v475
      %503 = vmatprep.subr.mxu0 0.0
      %504 = vmatpush1.msra.mxu0 0.0
      %505 = vmatprep.subr.mxu0 0.0
      %506 = vmatpush1.msra.mxu0 0.0
      %507 = vmatprep.subr.mxu0 0.0
      %508 = vmatpush1.msra.mxu0 0.0
      %509 = vmatprep.subr.mxu0 0.0
      %510 = vmatpush1.msra.mxu0 0.0
      %511 = vmatprep.subr.mxu0 0.0
      %512 = vmatpush1.msra.mxu0 0.0
      %513 = vmatprep.subr.mxu0 0.0
      %514 = vmatpush1.msra.mxu0 0.0
      %515 = vmatprep.subr.mxu0 0.0
      %516 = vmatpush1.msra.mxu0 0.0
      %517 = vmatprep.subr.mxu0 0.0
      %518 = vmatpush1.msra.mxu0 0.0
      %519 = vmatprep.subr.mxu0 0.0
      %520 = vmatpush1.msra.mxu0 0.0
      %521 = vmatprep.subr.mxu0 0.0
      %522 = vmatpush1.msra.mxu0 0.0
      %523 = vmatprep.subr.mxu0 0.0
      %524 = vmatpush1.msra.mxu0 0.0
      %525 = vmatprep.subr.mxu0 0.0
      %526 = vmatpush1.msra.mxu0 0.0
      %527 = vmatprep.subr.mxu0 0.0
      %528 = vmatpush1.msra.mxu0 0.0
      %529 = vmatprep.subr.mxu0 0.0
      %530 = vmatpush1.msra.mxu0 0.0
      %531 = vmatprep.subr.mxu0 0.0
      %532 = vmatpush1.msra.mxu0 0.0
      %533 = vmatprep.subr.mxu0 0.0
      %534 = vmatpush1.msra.mxu0 0.0
      %535 = vmatprep.subr.mxu0 0.0
      %536 = vmatpush1.msra.mxu0 0.0
      %537 = vmatprep.subr.mxu0 0.0
      %538 = vmatpush1.msra.mxu0 0.0
      %539 = vmatprep.subr.mxu0 0.0
      %540 = vmatpush1.msra.mxu0 0.0
      %541 = vmatprep.subr.mxu0 0.0
      %542 = vmatpush1.msra.mxu0 0.0
      %543 = vmatprep.subr.mxu0 0.0
      %544 = vmatpush1.msra.mxu0 0.0
      %545 = vmatprep.subr.mxu0 0.0
      %546 = vmatpush1.msra.mxu0 0.0
      %547 = vmatprep.subr.mxu0 0.0
      %548 = vmatpush1.msra.mxu0 0.0
      %549 = vmatprep.subr.mxu0 0.0
      %550 = vmatpush1.msra.mxu0 0.0
      %551 = vmatprep.mubr.f32.mxu0 0.0
      %552 = vmatmul.mubr.f32.gmra.mrb[0].mxu0 %v485
      %v553 = vpop.f32.mrb[0].mxu0
      %v554 = vadd.f32 %v481, %v553
      %v555 = vpop.f32.mrb[0].mxu0
      %556 = vdwg.mxu0
      %v557 = vmax.f32 %v554, 0.0
      %v558 = vld [vmem:[%s3] sm:$0xf]
      %v559 = vld [vmem:[%s4] sm:$0x1]
      %v561 = vlaneseq
      %v562 = vshrl.u32 %v561, 7
      %v563 = vsub.s32 0, %v562
      %v564 = vrot.slane %v559, %v563
      %vm566 = vcmask 31744
      %v568 = vsel %vm566, %v557, 0
      %vm570 = vcmask 1043456
      %v572 = vsel %vm570, %v558, 0
      %574 = vmatprep.subr.mxu0 0.0
      %575 = vmatpush1.msra.mxu0 %v572
      %576 = vmatprep.subr.mxu0 0.0
      %577 = vmatpush1.msra.mxu0 0.0
      %578 = vmatprep.subr.mxu0 0.0
      %579 = vmatpush1.msra.mxu0 0.0
      %580 = vmatprep.subr.mxu0 0.0
      %581 = vmatpush1.msra.mxu0 0.0
      %582 = vmatprep.subr.mxu0 0.0
      %583 = vmatpush1.msra.mxu0 0.0
      %584 = vmatprep.subr.mxu0 0.0
      %585 = vmatpush1.msra.mxu0 0.0
      %586 = vmatprep.subr.mxu0 0.0
      %587 = vmatpush1.msra.mxu0 0.0
      %588 = vmatprep.subr.mxu0 0.0
      %589 = vmatpush1.msra.mxu0 0.0
      %590 = vmatprep.subr.mxu0 0.0
      %591 = vmatpush1.msra.mxu0 0.0
      %592 = vmatprep.subr.mxu0 0.0
      %593 = vmatpush1.msra.mxu0 0.0
      %594 = vmatprep.subr.mxu0 0.0
      %595 = vmatpush1.msra.mxu0 0.0
      %596 = vmatprep.subr.mxu0 0.0
      %597 = vmatpush1.msra.mxu0 0.0
      %598 = vmatprep.subr.mxu0 0.0
      %599 = vmatpush1.msra.mxu0 0.0
      %600 = vmatprep.subr.mxu0 0.0
      %601 = vmatpush1.msra.mxu0 0.0
      %602 = vmatprep.subr.mxu0 0.0
      %603 = vmatpush1.msra.mxu0 0.0
      %604 = vmatprep.subr.mxu0 0.0
      %605 = vmatpush1.msra.mxu0 0.0
      %606 = vmatprep.subr.mxu0 0.0
      %607 = vmatpush1.msra.mxu0 0.0
      %608 = vmatprep.subr.mxu0 0.0
      %609 = vmatpush1.msra.mxu0 0.0
      %610 = vmatprep.subr.mxu0 0.0
      %611 = vmatpush1.msra.mxu0 0.0
      %612 = vmatprep.subr.mxu0 0.0
      %613 = vmatpush1.msra.mxu0 0.0
      %614 = vmatprep.subr.mxu0 0.0
      %615 = vmatpush1.msra.mxu0 0.0
      %616 = vmatprep.subr.mxu0 0.0
      %617 = vmatpush1.msra.mxu0 0.0
      %618 = vmatprep.subr.mxu0 0.0
      %619 = vmatpush1.msra.mxu0 0.0
      %620 = vmatprep.subr.mxu0 0.0
      %621 = vmatpush1.msra.mxu0 0.0
      %622 = vmatprep.subr.mxu0 0.0
      %623 = vmatpush1.msra.mxu0 0.0
      %624 = vmatprep.subr.mxu0 0.0
      %625 = vmatpush1.msra.mxu0 0.0
      %626 = vmatprep.subr.mxu0 0.0
      %627 = vmatpush1.msra.mxu0 0.0
      %628 = vmatprep.subr.mxu0 0.0
      %629 = vmatpush1.msra.mxu0 0.0
      %630 = vmatprep.subr.mxu0 0.0
      %631 = vmatpush1.msra.mxu0 0.0
      %632 = vmatprep.subr.mxu0 0.0
      %633 = vmatpush1.msra.mxu0 0.0
      %634 = vmatprep.subr.mxu0 0.0
      %635 = vmatpush1.msra.mxu0 0.0
      %636 = vmatprep.subr.mxu0 0.0
      %637 = vmatpush1.msra.mxu0 0.0
      %638 = vmatprep.mubr.f32.mxu0 0.0
      %639 = vmatmul.mubr.f32.gmra.mrb[0].mxu0 %v568
      %v640 = vpop.f32.mrb[0].mxu0
      %v641 = vadd.f32 %v564, %v640
      %v642 = vpop.f32.mrb[0].mxu0
      %643 = vdwg.mxu0
      %v645 = vrot.slane %v641, 1
      %v647 = vadd.f32 %v641, %v645
      %v648 = vxor.u32 %v647, 2147483648
      %v649 = vmul.f32 %v648, 1.442695
      %v650 = vpow.pop %v649
      %v651 = vadd.f32 %v650, 1.0
      %v652 = vrcp.pop %v651
      %v653 = vmul.f32 1.0, %v652
      %v654 = vlaneseq
      %v655 = vshrl.u32 %v654, 7
      %v656 = vsub.s32 0, %v655
      %v657 = vrot.slane %v653, %v656
      %659 = vbcast.lane.b32.xlu0 %v657, 256
      %v660 = vpop.permute.xlu0 %659
      %s662 = sor.u32 256, 8
      %663 = vbcast.lane.b32.xlu0 %v657, %s662
      %v664 = vpop.permute.xlu0 %663
      %s666 = sor.u32 256, 16
      %667 = vbcast.lane.b32.xlu0 %v657, %s666
      %v668 = vpop.permute.xlu0 %667
      %s670 = sor.u32 256, 24
      %671 = vbcast.lane.b32.xlu0 %v657, %s670
      %v672 = vpop.permute.xlu0 %671
      %s674 = sor.u32 256, 32
      %675 = vbcast.lane.b32.xlu0 %v657, %s674
      %v676 = vpop.permute.xlu0 %675
      %s678 = sor.u32 256, 40
      %679 = vbcast.lane.b32.xlu0 %v657, %s678
      %v680 = vpop.permute.xlu0 %679
      %s682 = sor.u32 256, 48
      %683 = vbcast.lane.b32.xlu0 %v657, %s682
      %v684 = vpop.permute.xlu0 %683
      %s686 = sor.u32 256, 56
      %687 = vbcast.lane.b32.xlu0 %v657, %s686
      %v688 = vpop.permute.xlu0 %687
      %v689 = vmul.f32 %v281, %v660
      %v690 = vmul.f32 %v282, %v660
      %v691 = vmul.f32 %v283, %v664
      %v692 = vmul.f32 %v284, %v664
      %v693 = vmul.f32 %v285, %v668
      %v694 = vmul.f32 %v286, %v668
      %v695 = vmul.f32 %v287, %v672
      %v696 = vmul.f32 %v288, %v672
      %v697 = vmul.f32 %v289, %v676
      %v698 = vmul.f32 %v290, %v676
      %v699 = vmul.f32 %v291, %v680
      %v700 = vmul.f32 %v292, %v680
      %v701 = vmul.f32 %v293, %v684
      %v702 = vmul.f32 %v294, %v684
      %v703 = vmul.f32 %v295, %v688
      %v704 = vmul.f32 %v296, %v688
      %v705 = vadd.f32 %v689, %v691
      %v706 = vadd.f32 %v705, %v693
      %v707 = vadd.f32 %v706, %v695
      %v708 = vadd.f32 %v707, %v697
      %v709 = vadd.f32 %v708, %v699
      %v710 = vadd.f32 %v709, %v701
      %v711 = vadd.f32 %v710, %v703
      %v712 = vrot.slane %v711, 4
      %v713 = vadd.f32 %v711, %v712
      %v714 = vrot.slane %v713, 2
      %v715 = vadd.f32 %v713, %v714
      %v716 = vrot.slane %v715, 1
      %v717 = vadd.f32 %v715, %v716
      %v718 = vadd.f32 %v690, %v692
      %v719 = vadd.f32 %v718, %v694
      %v720 = vadd.f32 %v719, %v696
      %v721 = vadd.f32 %v720, %v698
      %v722 = vadd.f32 %v721, %v700
      %v723 = vadd.f32 %v722, %v702
      %v724 = vadd.f32 %v723, %v704
      %v725 = vrot.slane %v724, 4
      %v726 = vadd.f32 %v724, %v725
      %v727 = vrot.slane %v726, 2
      %v728 = vadd.f32 %v726, %v727
      %v729 = vrot.slane %v728, 1
      %v730 = vadd.f32 %v728, %v729
      %v731 = vrcp.pop 64.0
      %v732 = vmul.f32 %v717, %v731
      %v733 = vmul.f32 %v730, %v731
      %v734 = vmax.f32 %v689, %v693
      %v735 = vmax.f32 %v691, %v695
      %v736 = vmax.f32 %v734, %v697
      %v737 = vmax.f32 %v735, %v699
      %v738 = vmax.f32 %v736, %v701
      %v739 = vmax.f32 %v737, %v703
      %v740 = vmax.f32 %v738, %v739
      %v741 = vrot.slane %v740, 4
      %v742 = vmax.f32 %v740, %v741
      %v743 = vrot.slane %v742, 2
      %v744 = vmax.f32 %v742, %v743
      %v745 = vrot.slane %v744, 1
      %v746 = vmax.f32 %v744, %v745
      %v747 = vmax.f32 %v690, %v694
      %v748 = vmax.f32 %v692, %v696
      %v749 = vmax.f32 %v747, %v698
      %v750 = vmax.f32 %v748, %v700
      %v751 = vmax.f32 %v749, %v702
      %v752 = vmax.f32 %v750, %v704
      %v753 = vmax.f32 %v751, %v752
      %v754 = vrot.slane %v753, 4
      %v755 = vmax.f32 %v753, %v754
      %v756 = vrot.slane %v755, 2
      %v757 = vmax.f32 %v755, %v756
      %v758 = vrot.slane %v757, 1
      %v759 = vmax.f32 %v757, %v758
      %v760 = vld [vmem:[%s5] sm:$0xff]
      %v761 = vld [vmem:[%s5 + $0x8] sm:$0xff]
      %v762 = vld [vmem:[%s5 + $0x10] sm:$0xff]
      %v763 = vld [vmem:[%s5 + $0x18] sm:$0xff]
      %v764 = vld [vmem:[%s5 + $0x20] sm:$0xff]
      %v765 = vld [vmem:[%s5 + $0x28] sm:$0xff]
      %v766 = vld [vmem:[%s5 + $0x30] sm:$0xff]
      %v767 = vld [vmem:[%s5 + $0x38] sm:$0xff]
      %v768 = vld [vmem:[%s5 + $0x40] sm:$0xff]
      %v769 = vld [vmem:[%s5 + $0x48] sm:$0xff]
      %v770 = vld [vmem:[%s5 + $0x50] sm:$0xff]
      %v771 = vld [vmem:[%s5 + $0x58] sm:$0xff]
      %v772 = vld [vmem:[%s5 + $0x60] sm:$0xff]
      %v773 = vld [vmem:[%s5 + $0x68] sm:$0xff]
      %v774 = vld [vmem:[%s5 + $0x70] sm:$0xff]
      %v775 = vld [vmem:[%s5 + $0x78] sm:$0xff]
      %v776 = vld [vmem:[%s5 + $0x80] sm:$0xff]
      %v777 = vld [vmem:[%s5 + $0x88] sm:$0xff]
      %v778 = vld [vmem:[%s5 + $0x90] sm:$0xff]
      %v779 = vld [vmem:[%s5 + $0x98] sm:$0xff]
      %v780 = vld [vmem:[%s5 + $0xa0] sm:$0xff]
      %v781 = vld [vmem:[%s5 + $0xa8] sm:$0xff]
      %v782 = vld [vmem:[%s5 + $0xb0] sm:$0xff]
      %v783 = vld [vmem:[%s5 + $0xb8] sm:$0xff]
      %v784 = vld [vmem:[%s5 + $0xc0] sm:$0xff]
      %v785 = vld [vmem:[%s5 + $0xc8] sm:$0xff]
      %v786 = vld [vmem:[%s5 + $0xd0] sm:$0xff]
      %v787 = vld [vmem:[%s5 + $0xd8] sm:$0xff]
      %v788 = vld [vmem:[%s5 + $0xe0] sm:$0xff]
      %v789 = vld [vmem:[%s5 + $0xe8] sm:$0xff]
      %v790 = vld [vmem:[%s5 + $0xf0] sm:$0xff]
      %v791 = vld [vmem:[%s5 + $0xf8] sm:$0xff]
      %v792 = vld [vmem:[%s5 + $0x100] sm:$0xff]
      %v793 = vld [vmem:[%s5 + $0x108] sm:$0xff]
      %v794 = vld [vmem:[%s5 + $0x110] sm:$0xff]
      %v795 = vld [vmem:[%s5 + $0x118] sm:$0xff]
      %v796 = vld [vmem:[%s5 + $0x120] sm:$0xff]
      %v797 = vld [vmem:[%s5 + $0x128] sm:$0xff]
      %v798 = vld [vmem:[%s5 + $0x130] sm:$0xff]
      %v799 = vld [vmem:[%s5 + $0x138] sm:$0xff]
      %v800 = vld [vmem:[%s5 + $0x140] sm:$0xff]
      %v801 = vld [vmem:[%s5 + $0x148] sm:$0xff]
      %v802 = vld [vmem:[%s5 + $0x150] sm:$0xff]
      %v803 = vld [vmem:[%s5 + $0x158] sm:$0xff]
      %v804 = vld [vmem:[%s5 + $0x160] sm:$0xff]
      %v805 = vld [vmem:[%s5 + $0x168] sm:$0xff]
      %v806 = vld [vmem:[%s5 + $0x170] sm:$0xff]
      %v807 = vld [vmem:[%s5 + $0x178] sm:$0xff]
      %v808 = vld [vmem:[%s5 + $0x180] sm:$0xff]
      %v809 = vld [vmem:[%s5 + $0x188] sm:$0xff]
      %v810 = vld [vmem:[%s5 + $0x190] sm:$0xff]
      %v811 = vld [vmem:[%s5 + $0x198] sm:$0xff]
      %v812 = vld [vmem:[%s5 + $0x1a0] sm:$0xff]
      %v813 = vld [vmem:[%s5 + $0x1a8] sm:$0xff]
      %v814 = vld [vmem:[%s5 + $0x1b0] sm:$0xff]
      %v815 = vld [vmem:[%s5 + $0x1b8] sm:$0xff]
      %v816 = vld [vmem:[%s5 + $0x1c0] sm:$0xff]
      %v817 = vld [vmem:[%s5 + $0x1c8] sm:$0xff]
      %v818 = vld [vmem:[%s5 + $0x1d0] sm:$0xff]
      %v819 = vld [vmem:[%s5 + $0x1d8] sm:$0xff]
      %v820 = vld [vmem:[%s5 + $0x1e0] sm:$0xff]
      %v821 = vld [vmem:[%s5 + $0x1e8] sm:$0xff]
      %v822 = vld [vmem:[%s5 + $0x1f0] sm:$0xff]
      %v823 = vld [vmem:[%s5 + $0x1f8] sm:$0xff]
      %v824 = vld [vmem:[%s5 + $0x200] sm:$0xff]
      %v825 = vld [vmem:[%s5 + $0x208] sm:$0xff]
      %v826 = vld [vmem:[%s5 + $0x210] sm:$0xff]
      %v827 = vld [vmem:[%s5 + $0x218] sm:$0xff]
      %v828 = vld [vmem:[%s5 + $0x220] sm:$0xff]
      %v829 = vld [vmem:[%s5 + $0x228] sm:$0xff]
      %v830 = vld [vmem:[%s5 + $0x230] sm:$0xff]
      %v831 = vld [vmem:[%s5 + $0x238] sm:$0xff]
      %v832 = vld [vmem:[%s5 + $0x240] sm:$0xff]
      %v833 = vld [vmem:[%s5 + $0x248] sm:$0xff]
      %v834 = vld [vmem:[%s5 + $0x250] sm:$0xff]
      %v835 = vld [vmem:[%s5 + $0x258] sm:$0xff]
      %v836 = vld [vmem:[%s5 + $0x260] sm:$0xff]
      %v837 = vld [vmem:[%s5 + $0x268] sm:$0xff]
      %v838 = vld [vmem:[%s5 + $0x270] sm:$0xff]
      %v839 = vld [vmem:[%s5 + $0x278] sm:$0xff]
      %v840 = vld [vmem:[%s5 + $0x280] sm:$0xff]
      %v841 = vld [vmem:[%s5 + $0x288] sm:$0xff]
      %v842 = vld [vmem:[%s5 + $0x290] sm:$0xff]
      %v843 = vld [vmem:[%s5 + $0x298] sm:$0xff]
      %v844 = vld [vmem:[%s5 + $0x2a0] sm:$0xff]
      %v845 = vld [vmem:[%s5 + $0x2a8] sm:$0xff]
      %v846 = vld [vmem:[%s5 + $0x2b0] sm:$0xff]
      %v847 = vld [vmem:[%s5 + $0x2b8] sm:$0xff]
      %v848 = vld [vmem:[%s5 + $0x2c0] sm:$0xff]
      %v849 = vld [vmem:[%s5 + $0x2c8] sm:$0xff]
      %v850 = vld [vmem:[%s5 + $0x2d0] sm:$0xff]
      %v851 = vld [vmem:[%s5 + $0x2d8] sm:$0xff]
      %v852 = vld [vmem:[%s5 + $0x2e0] sm:$0xff]
      %v853 = vld [vmem:[%s5 + $0x2e8] sm:$0xff]
      %v854 = vld [vmem:[%s5 + $0x2f0] sm:$0xff]
      %v855 = vld [vmem:[%s5 + $0x2f8] sm:$0xff]
      %v856 = vld [vmem:[%s5 + $0x300] sm:$0xff]
      %v857 = vld [vmem:[%s5 + $0x308] sm:$0xff]
      %v858 = vld [vmem:[%s5 + $0x310] sm:$0xff]
      %v859 = vld [vmem:[%s5 + $0x318] sm:$0xff]
      %v860 = vld [vmem:[%s5 + $0x320] sm:$0xff]
      %v861 = vld [vmem:[%s5 + $0x328] sm:$0xff]
      %v862 = vld [vmem:[%s5 + $0x330] sm:$0xff]
      %v863 = vld [vmem:[%s5 + $0x338] sm:$0xff]
      %v864 = vld [vmem:[%s5 + $0x340] sm:$0xff]
      %v865 = vld [vmem:[%s5 + $0x348] sm:$0xff]
      %v866 = vld [vmem:[%s5 + $0x350] sm:$0xff]
      %v867 = vld [vmem:[%s5 + $0x358] sm:$0xff]
      %v868 = vld [vmem:[%s5 + $0x360] sm:$0xff]
      %v869 = vld [vmem:[%s5 + $0x368] sm:$0xff]
      %v870 = vld [vmem:[%s5 + $0x370] sm:$0xff]
      %v871 = vld [vmem:[%s5 + $0x378] sm:$0xff]
      %v872 = vld [vmem:[%s5 + $0x380] sm:$0xff]
      %v873 = vld [vmem:[%s5 + $0x388] sm:$0xff]
      %v874 = vld [vmem:[%s5 + $0x390] sm:$0xff]
      %v875 = vld [vmem:[%s5 + $0x398] sm:$0xff]
      %v876 = vld [vmem:[%s5 + $0x3a0] sm:$0xff]
      %v877 = vld [vmem:[%s5 + $0x3a8] sm:$0xff]
      %v878 = vld [vmem:[%s5 + $0x3b0] sm:$0xff]
      %v879 = vld [vmem:[%s5 + $0x3b8] sm:$0xff]
      %v880 = vld [vmem:[%s5 + $0x3c0] sm:$0xff]
      %v881 = vld [vmem:[%s5 + $0x3c8] sm:$0xff]
      %v882 = vld [vmem:[%s5 + $0x3d0] sm:$0xff]
      %v883 = vld [vmem:[%s5 + $0x3d8] sm:$0xff]
      %v884 = vld [vmem:[%s5 + $0x3e0] sm:$0xff]
      %v885 = vld [vmem:[%s5 + $0x3e8] sm:$0xff]
      %v886 = vld [vmem:[%s5 + $0x3f0] sm:$0xff]
      %v887 = vld [vmem:[%s5 + $0x3f8] sm:$0xff]
      %v888 = vld [vmem:[#allocation2] sm:$0x1]
      %890 = vset.pattern.permute.xlu0 0
      %891 = vperm.xlu0 %890, %v888
      %v892 = vpop.permute.xlu0 %891
      %v894 = vlaneseq
      %v895 = vshrl.u32 %v894, 7
      %v896 = vsub.s32 0, %v895
      %v897 = vrot.slane %v892, %v896
      %898 = vmatprep.subr.mxu0 %v761
      %899 = vmatpush1.msra.mxu0 %v760
      %900 = vmatprep.subr.mxu0 %v763
      %901 = vmatpush1.msra.mxu0 %v762
      %902 = vmatprep.subr.mxu0 %v765
      %903 = vmatpush1.msra.mxu0 %v764
      %904 = vmatprep.subr.mxu0 %v767
      %905 = vmatpush1.msra.mxu0 %v766
      %906 = vmatprep.subr.mxu0 %v769
      %907 = vmatpush1.msra.mxu0 %v768
      %908 = vmatprep.subr.mxu0 %v771
      %909 = vmatpush1.msra.mxu0 %v770
      %910 = vmatprep.subr.mxu0 %v773
      %911 = vmatpush1.msra.mxu0 %v772
      %912 = vmatprep.subr.mxu0 %v775
      %913 = vmatpush1.msra.mxu0 %v774
      %914 = vmatprep.subr.mxu0 %v777
      %915 = vmatpush1.msra.mxu0 %v776
      %916 = vmatprep.subr.mxu0 %v779
      %917 = vmatpush1.msra.mxu0 %v778
      %918 = vmatprep.subr.mxu0 %v781
      %919 = vmatpush1.msra.mxu0 %v780
      %920 = vmatprep.subr.mxu0 %v783
      %921 = vmatpush1.msra.mxu0 %v782
      %922 = vmatprep.subr.mxu0 %v785
      %923 = vmatpush1.msra.mxu0 %v784
      %924 = vmatprep.subr.mxu0 %v787
      %925 = vmatpush1.msra.mxu0 %v786
      %926 = vmatprep.subr.mxu0 %v789
      %927 = vmatpush1.msra.mxu0 %v788
      %928 = vmatprep.subr.mxu0 %v791
      %929 = vmatpush1.msra.mxu0 %v790
      %930 = vmatprep.subr.mxu0 %v793
      %931 = vmatpush1.msra.mxu0 %v792
      %932 = vmatprep.subr.mxu0 %v795
      %933 = vmatpush1.msra.mxu0 %v794
      %934 = vmatprep.subr.mxu0 %v797
      %935 = vmatpush1.msra.mxu0 %v796
      %936 = vmatprep.subr.mxu0 %v799
      %937 = vmatpush1.msra.mxu0 %v798
      %938 = vmatprep.subr.mxu0 %v801
      %939 = vmatpush1.msra.mxu0 %v800
      %940 = vmatprep.subr.mxu0 %v803
      %941 = vmatpush1.msra.mxu0 %v802
      %942 = vmatprep.subr.mxu0 %v805
      %943 = vmatpush1.msra.mxu0 %v804
      %944 = vmatprep.subr.mxu0 %v807
      %945 = vmatpush1.msra.mxu0 %v806
      %946 = vmatprep.subr.mxu0 %v809
      %947 = vmatpush1.msra.mxu0 %v808
      %948 = vmatprep.subr.mxu0 %v811
      %949 = vmatpush1.msra.mxu0 %v810
      %950 = vmatprep.subr.mxu0 %v813
      %951 = vmatpush1.msra.mxu0 %v812
      %952 = vmatprep.subr.mxu0 %v815
      %953 = vmatpush1.msra.mxu0 %v814
      %954 = vmatprep.subr.mxu0 %v817
      %955 = vmatpush1.msra.mxu0 %v816
      %956 = vmatprep.subr.mxu0 %v819
      %957 = vmatpush1.msra.mxu0 %v818
      %958 = vmatprep.subr.mxu0 %v821
      %959 = vmatpush1.msra.mxu0 %v820
      %960 = vmatprep.subr.mxu0 %v823
      %961 = vmatpush1.msra.mxu0 %v822
      %962 = vmatprep.mubr.f32.mxu0 %v733
      %963 = vmatmul.mubr.f32.gmra.mrb[0].mxu0 %v732
      %v964 = vpop.f32.mrb[0].mxu0
      %v965 = vadd.f32 %v897, %v964
      %v966 = vpop.f32.mrb[0].mxu0
      %v967 = vadd.f32 %v897, %v966
      %968 = vdwg.mxu0
      %969 = vmatprep.subr.mxu0 %v825
      %970 = vmatpush1.msra.mxu0 %v824
      %971 = vmatprep.subr.mxu0 %v827
      %972 = vmatpush1.msra.mxu0 %v826
      %973 = vmatprep.subr.mxu0 %v829
      %974 = vmatpush1.msra.mxu0 %v828
      %975 = vmatprep.subr.mxu0 %v831
      %976 = vmatpush1.msra.mxu0 %v830
      %977 = vmatprep.subr.mxu0 %v833
      %978 = vmatpush1.msra.mxu0 %v832
      %979 = vmatprep.subr.mxu0 %v835
      %980 = vmatpush1.msra.mxu0 %v834
      %981 = vmatprep.subr.mxu0 %v837
      %982 = vmatpush1.msra.mxu0 %v836
      %983 = vmatprep.subr.mxu0 %v839
      %984 = vmatpush1.msra.mxu0 %v838
      %985 = vmatprep.subr.mxu0 %v841
      %986 = vmatpush1.msra.mxu0 %v840
      %987 = vmatprep.subr.mxu0 %v843
      %988 = vmatpush1.msra.mxu0 %v842
      %989 = vmatprep.subr.mxu0 %v845
      %990 = vmatpush1.msra.mxu0 %v844
      %991 = vmatprep.subr.mxu0 %v847
      %992 = vmatpush1.msra.mxu0 %v846
      %993 = vmatprep.subr.mxu0 %v849
      %994 = vmatpush1.msra.mxu0 %v848
      %995 = vmatprep.subr.mxu0 %v851
      %996 = vmatpush1.msra.mxu0 %v850
      %997 = vmatprep.subr.mxu0 %v853
      %998 = vmatpush1.msra.mxu0 %v852
      %999 = vmatprep.subr.mxu0 %v855
      %1000 = vmatpush1.msra.mxu0 %v854
      %1001 = vmatprep.subr.mxu0 %v857
      %1002 = vmatpush1.msra.mxu0 %v856
      %1003 = vmatprep.subr.mxu0 %v859
      %1004 = vmatpush1.msra.mxu0 %v858
      %1005 = vmatprep.subr.mxu0 %v861
      %1006 = vmatpush1.msra.mxu0 %v860
      %1007 = vmatprep.subr.mxu0 %v863
      %1008 = vmatpush1.msra.mxu0 %v862
      %1009 = vmatprep.subr.mxu0 %v865
      %1010 = vmatpush1.msra.mxu0 %v864
      %1011 = vmatprep.subr.mxu0 %v867
      %1012 = vmatpush1.msra.mxu0 %v866
      %1013 = vmatprep.subr.mxu0 %v869
      %1014 = vmatpush1.msra.mxu0 %v868
      %1015 = vmatprep.subr.mxu0 %v871
      %1016 = vmatpush1.msra.mxu0 %v870
      %1017 = vmatprep.subr.mxu0 %v873
      %1018 = vmatpush1.msra.mxu0 %v872
      %1019 = vmatprep.subr.mxu0 %v875
      %1020 = vmatpush1.msra.mxu0 %v874
      %1021 = vmatprep.subr.mxu0 %v877
      %1022 = vmatpush1.msra.mxu0 %v876
      %1023 = vmatprep.subr.mxu0 %v879
      %1024 = vmatpush1.msra.mxu0 %v878
      %1025 = vmatprep.subr.mxu0 %v881
      %1026 = vmatpush1.msra.mxu0 %v880
      %1027 = vmatprep.subr.mxu0 %v883
      %1028 = vmatpush1.msra.mxu0 %v882
      %1029 = vmatprep.subr.mxu0 %v885
      %1030 = vmatpush1.msra.mxu0 %v884
      %1031 = vmatprep.subr.mxu0 %v887
      %1032 = vmatpush1.msra.mxu0 %v886
      %1033 = vmatprep.mubr.f32.mxu0 %v759
      %1034 = vmatmul.mubr.f32.gmra.mrb[0].mxu0 %v746
      %v1035 = vpop.f32.mrb[0].mxu0
      %v1036 = vadd.f32 %v965, %v1035
      %v1037 = vpop.f32.mrb[0].mxu0
      %v1038 = vadd.f32 %v967, %v1037
      %1039 = vdwg.mxu0
      %v1040 = vxor.u32 %v1036, 2147483648
      %v1041 = vxor.u32 %v1038, 2147483648
      %v1042 = vmul.f32 %v1040, 1.442695
      %v1043 = vpow.pop %v1042
      %v1044 = vmul.f32 %v1041, 1.442695
      %v1045 = vpow.pop %v1044
      %v1046 = vadd.f32 %v1043, 1.0
      %v1047 = vadd.f32 %v1045, 1.0
      %v1048 = vrcp.pop %v1046
      %v1049 = vmul.f32 1.0, %v1048
      %v1050 = vrcp.pop %v1047
      %v1051 = vmul.f32 1.0, %v1050
      %v1052 = vlaneseq
      %v1053 = vshrl.u32 %v1052, 7
      %v1054 = vsub.s32 0, %v1053
      %v1055 = vrot.slane %v1049, %v1054
      %v1056 = vlaneseq
      %v1057 = vshrl.u32 %v1056, 7
      %v1058 = vsub.s32 0, %v1057
      %v1059 = vrot.slane %v1051, %v1058
      %v1060 = vmul.f32 %v689, %v1055
      %v1061 = vmul.f32 %v690, %v1059
      %v1062 = vmul.f32 %v691, %v1055
      %v1063 = vmul.f32 %v692, %v1059
      %v1064 = vmul.f32 %v693, %v1055
      %v1065 = vmul.f32 %v694, %v1059
      %v1066 = vmul.f32 %v695, %v1055
      %v1067 = vmul.f32 %v696, %v1059
      %v1068 = vmul.f32 %v697, %v1055
      %v1069 = vmul.f32 %v698, %v1059
      %v1070 = vmul.f32 %v699, %v1055
      %v1071 = vmul.f32 %v700, %v1059
      %v1072 = vmul.f32 %v701, %v1055
      %v1073 = vmul.f32 %v702, %v1059
      %v1074 = vmul.f32 %v703, %v1055
      %v1075 = vmul.f32 %v704, %v1059
      %1076 = vst [vmem:[%s280] sm:$0xff] %v1060
      %1077 = vst [vmem:[%s280 + $0x8] sm:$0xff] %v1061
      %1078 = vst [vmem:[%s280 + $0x10] sm:$0xff] %v1062
      %1079 = vst [vmem:[%s280 + $0x18] sm:$0xff] %v1063
      %1080 = vst [vmem:[%s280 + $0x20] sm:$0xff] %v1064
      %1081 = vst [vmem:[%s280 + $0x28] sm:$0xff] %v1065
      %1082 = vst [vmem:[%s280 + $0x30] sm:$0xff] %v1066
      %1083 = vst [vmem:[%s280 + $0x38] sm:$0xff] %v1067
      %1084 = vst [vmem:[%s280 + $0x40] sm:$0xff] %v1068
      %1085 = vst [vmem:[%s280 + $0x48] sm:$0xff] %v1069
      %1086 = vst [vmem:[%s280 + $0x50] sm:$0xff] %v1070
      %1087 = vst [vmem:[%s280 + $0x58] sm:$0xff] %v1071
      %1088 = vst [vmem:[%s280 + $0x60] sm:$0xff] %v1072
      %1089 = vst [vmem:[%s280 + $0x68] sm:$0xff] %v1073
      %1090 = vst [vmem:[%s280 + $0x70] sm:$0xff] %v1074
      %1091 = vst [vmem:[%s280 + $0x78] sm:$0xff] %v1075
      %p1092 = scmp.lt.s32.totalorder %s20, 1
      %s1093 = scalar_select %p1092, %s20, 1
      %s1094 = smul.addr %s1093, 16
      %s1095 = smul.addr %s1094, 8
      %s1096 = scalar_lea.vmem %s7, %s1095
      // Predicated region
      $region49: #{cbam_forward.1} parent=47 // pred_check
        %p1097 = pneg %p190
      $region50: #{cbam_forward.1} parent=47 // pred_check_branch
        %1099 = sbr.rel (%p1097) target = $region52
      $region51: #{cbam_forward.1} parent=47 // pred_region
        _
      $region52: #{cbam_forward.1} parent=47 // pred_fallthru
        _
    $region48: #{cbam_forward.1} parent=5 // pred_fallthru
      _
    %p1100 = scmp.le.s32.totalorder 2, %s15
    // Predicated region
    $region53: #{cbam_forward.1} parent=5 // pred_check
      %p1101 = pneg %p1100
    $region54: #{cbam_forward.1} parent=5 // pred_check_branch
      %1103 = sbr.rel (%p1101) target = $region56
    $region55: #{cbam_forward.1} parent=5 // pred_region
      %s1104 = ssub.s32 %s15, 2
      // Predicated region
      $region57: #{cbam_forward.1} parent=55 // pred_check
        %p1105 = pneg %p196
      $region58: #{cbam_forward.1} parent=55 // pred_check_branch
        %1107 = sbr.rel (%p1105) target = $region60
      $region59: #{cbam_forward.1} parent=55 // pred_region
        %p1108 = scmp.lt.s32.totalorder %s21, 1
        %s1109 = scalar_select %p1108, %s21, 1
        %s1110 = smul.addr %s1109, 16
        %s1111 = smul.addr %s1110, 8
        %s1112 = scalar_lea.vmem %s7, %s1111
      $region60: #{cbam_forward.1} parent=55 // pred_fallthru
        _
    $region56: #{cbam_forward.1} parent=5 // pred_fallthru
      _
  $region6: #{cbam_forward.1} parent=0 // loop_footer
    %s19 = sadd.s32 1, %s15
  $region7: #{cbam_forward.1} parent=0 // loop_footer_branch
    %14 = sbr.rel target = $region3
  $region8: #{cbam_forward.1} parent=0 // loop_exit
    _

</llo_original>
